<compile_context>
chip_gen: v5e
topology: v5e:2x2
jax: 0.10.0
libtpu: 0.0.40
codegen_flags: <defaults>
</compile_context>

<pallas_src>
import functools

import jax
import jax.numpy as jnp
from jax.experimental import pallas as pl
from jax.experimental.pallas import tpu as pltpu

EMB_DIM = 50
HIDDEN = 64


def _ceil_to(x, m):
    return -(-x // m) * m


# ---------------------------------------------------------------------------
# Pallas kernel: projection + recurrence + time-step gather, one invocation per
# batch chunk (grid axis is batch-parallel).
# ---------------------------------------------------------------------------
def rnn_kernel(x_ref, idx_ref, wih_ref, whh_ref, b_ref, out_ref, proj_ref, *,
               seq_len, bchunk):
    """x_ref: (T*bchunk, EMB_DIM) bf16 time-major for this batch chunk.
    idx_ref: (bchunk, HIDDEN) int32 gather time index.  out_ref: (bchunk, HIDDEN) f32.
    proj_ref: (T*bchunk, HIDDEN) f32 VMEM scratch."""
    # 1) Input projection for ALL timesteps as one MXU matmul (bf16 x bf16 -> f32 acc),
    #    both RNN biases folded in.  Written to a scratch that is only READ inside the
    #    time loop, so the per-step load is never ordered behind a store to the same ref.
    proj_ref[...] = (
        jnp.dot(x_ref[...], wih_ref[...], preferred_element_type=jnp.float32)
        + b_ref[...]
    )

    w_hh = whh_ref[...]        # hoisted weight load (4 vregs), stays resident
    idx = idx_ref[...]         # per-(row, feature) gather index

    # 2) Recurrence.  h0 == 0, so step 0 is just tanh of the projected input.
    h0 = jnp.tanh(proj_ref[pl.ds(0, bchunk), :])
    acc0 = jnp.where(idx == 0, h0, jnp.zeros_like(h0))

    def step(t, carry):
        h_prev, acc = carry
        base = pl.multiple_of(t * bchunk, bchunk)      # sublane-aligned dynamic slice
        z = proj_ref[pl.ds(base, bchunk), :] + jnp.dot(
            h_prev, w_hh, preferred_element_type=jnp.float32)
        h_new = jnp.tanh(z)
        # In-kernel gather: cheap per-step VPU select (rides a free VALU slot) instead of
        # writing the whole rec tensor to HBM and gathering it back.
        acc = jnp.where(idx == t, h_new, acc)
        return h_new, acc

    # Batch-aware unroll: keep the unrolled window's live temporaries well under the
    # 64-vreg budget (W_hh + h/z/acc/idx already hold several).
    row_bytes = bchunk * HIDDEN * 4
    if seq_len <= 32 and row_bytes <= 16 * 1024:
        unroll = True
    elif row_bytes <= 16 * 1024:
        unroll = 8
    elif row_bytes <= 64 * 1024:
        unroll = 4
    else:
        unroll = 2

    _, acc = jax.lax.fori_loop(1, seq_len, step, (h0, acc0), unroll=unroll)
    out_ref[...] = acc


def _choose_batch_tiling(batch, seq_len, x_itemsize=2):
    """Pick (b_pad, bchunk, n_chunks).

    bchunk is a multiple of 16 (bf16 sublane packing) sized so each program's resident
    VMEM (double-buffered x block + f32 projection scratch) stays well under the scoped
    limits; for b_pad >= 32 at least two chunks are used so v7x's two TensorCores both
    get work (the grid axis is "parallel"; no effect on v5e/v6e).
    """
    bytes_per_row = seq_len * (2 * x_itemsize * EMB_DIM + 4 * HIDDEN)
    budget = 24 * 1024 * 1024
    max_rows = max(16, (budget // max(1, bytes_per_row)) // 16 * 16)
    b16 = max(16, _ceil_to(batch, 16))
    if b16 >= 32:
        bchunk = min(_ceil_to(b16 // 2, 16), max_rows)
    else:
        bchunk = min(b16, max_rows)
    n_chunks = _ceil_to(b16, bchunk) // bchunk
    return n_chunks * bchunk, bchunk, n_chunks


def rnn_forward(x_flat, idx, w_ih_t, w_hh_t, bias, *, seq_len, bchunk, n_chunks):
    """x_flat: (n_chunks*T*bchunk, EMB_DIM) bf16, chunk-major / time-major;
    idx: (B_pad, HIDDEN) int32.  Returns the gathered hidden state (B_pad, HIDDEN) f32."""
    b_pad = n_chunks * bchunk
    kernel = functools.partial(rnn_kernel, seq_len=seq_len, bchunk=bchunk)

    vmem_bytes = int(
        2 * seq_len * bchunk * EMB_DIM * x_flat.dtype.itemsize      # x block (dbl-buffered)
        + seq_len * bchunk * HIDDEN * 4                             # proj scratch
        + 4 * bchunk * HIDDEN * 4                                   # idx + out blocks
        + 2 * (EMB_DIM * HIDDEN * w_ih_t.dtype.itemsize
               + HIDDEN * HIDDEN * 4 + HIDDEN * 4)                  # weights + bias
    )
    vmem_limit = min(64 * 1024 * 1024, max(32 * 1024 * 1024, int(vmem_bytes * 1.5)))

    return pl.pallas_call(
        kernel,
        out_shape=jax.ShapeDtypeStruct((b_pad, HIDDEN), jnp.float32),
        grid_spec=pltpu.PrefetchScalarGridSpec(
            num_scalar_prefetch=0,
            grid=(n_chunks,),
            in_specs=[
                pl.BlockSpec((seq_len * bchunk, EMB_DIM), lambda c: (c, 0)),  # x chunk
                pl.BlockSpec((bchunk, HIDDEN), lambda c: (c, 0)),             # gather idx
                pl.BlockSpec((EMB_DIM, HIDDEN), lambda c: (0, 0)),            # W_ih^T (bf16)
                pl.BlockSpec((HIDDEN, HIDDEN), lambda c: (0, 0)),             # W_hh^T (f32)
                pl.BlockSpec((1, HIDDEN), lambda c: (0, 0)),                  # b_ih + b_hh
            ],
            out_specs=pl.BlockSpec((bchunk, HIDDEN), lambda c: (c, 0)),
            scratch_shapes=[pltpu.VMEM((seq_len * bchunk, HIDDEN), jnp.float32)],
        ),
        compiler_params=pltpu.CompilerParams(
            dimension_semantics=("parallel",),
            vmem_limit_bytes=vmem_limit,
        ),
    )(x_flat, idx, w_ih_t, w_hh_t, bias)


# ---------------------------------------------------------------------------
# Forward pass (mirror of RNN_e.forward)
# ---------------------------------------------------------------------------
def rnn_e_forward(params, data, mask):
    """data: (B, T) int32 token ids; mask: (B, 1, HIDDEN) int32 time indices.

    Returns (B, label_num) float32 logits.
    """
    B, T = data.shape
    b_pad, bchunk, n_chunks = _choose_batch_tiling(B, T)

    # Reorder the tiny int32 token-id array so the embedding gather directly produces x
    # in (chunk, time, batch-in-chunk) order -- no transpose of 50-wide activations.
    data_p = jnp.pad(data, ((0, b_pad - B), (0, 0)))                             # (B_pad, T)
    data_ctb = jnp.transpose(data_p.reshape(n_chunks, bchunk, T), (0, 2, 1))     # (C, T, bc)
    embed = params["embedding"][data_ctb].astype(jnp.bfloat16)                   # (C,T,bc,50)
    x_flat = embed.reshape(n_chunks * T * bchunk, EMB_DIM)
    # Dropout is identity at inference.

    # torch: rec.gather(1, mask) -> per-(row, feature) time index (clamped like
    # take_along_axis / the reference).
    idx = jnp.clip(mask[:, 0, :], 0, T - 1).astype(jnp.int32)                    # (B, 64)
    idx = jnp.pad(idx, ((0, b_pad - B), (0, 0)))                                 # (B_pad, 64)

    gathered = rnn_forward(
        x_flat, idx,
        params["w_ih_t"].astype(jnp.bfloat16),
        params["w_hh_t"],
        params["rnn_bias"],
        seq_len=T, bchunk=bchunk, n_chunks=n_chunks,
    )[:B]                                                                        # (B, 64)

    # Final tiny linear in plain jnp (fuses with the slice).
    return gathered @ params["w_l_t"] + params["b_l"]                            # (B, label_num)


# ---------------------------------------------------------------------------
# Deterministic parameter init (shapes from RNN_e.__init__)
# ---------------------------------------------------------------------------
def init_params(key, vect_len, label_num):
    ks = jax.random.split(key, 7)
    vocab = vect_len + 2
    embedding = jax.random.normal(ks[0], (vocab, EMB_DIM), jnp.float32) * 0.1
    w_ih = jax.random.normal(ks[1], (HIDDEN, EMB_DIM), jnp.float32) * 0.1
    w_hh = jax.random.normal(ks[2], (HIDDEN, HIDDEN), jnp.float32) * 0.1
    b_ih = jax.random.normal(ks[3], (HIDDEN,), jnp.float32) * 0.1
    b_hh = jax.random.normal(ks[4], (HIDDEN,), jnp.float32) * 0.1
    w_l = jax.random.normal(ks[5], (label_num, HIDDEN), jnp.float32) * 0.1
    b_l = jax.random.normal(ks[6], (label_num,), jnp.float32) * 0.1
    return {
        "embedding": embedding,
        "w_ih_t": w_ih.T,                                # (50, 64), cast to bf16 at call
        "w_hh_t": w_hh.T,                                # (64, 64) f32
        "rnn_bias": (b_ih + b_hh).reshape(1, HIDDEN),    # (1, 64) f32
        "w_l_t": w_l.T,                                  # (64, label_num)
        "b_l": b_l.reshape(1, label_num),                # (1, label_num)
    }


# ---------------------------------------------------------------------------
# Pure-JAX reference for correctness
# ---------------------------------------------------------------------------
def reference_forward(params, data, mask, proj_dtype=jnp.float32):
    embed = params["embedding"][data].astype(proj_dtype)        # (B, T, 50)
    w_ih = params["w_ih_t"].astype(proj_dtype)
    B, T, _ = embed.shape
    h = jnp.zeros((B, HIDDEN), jnp.float32)
    recs = []
    for t in range(T):
        proj = jnp.dot(embed[:, t, :], w_ih, preferred_element_type=jnp.float32)
        h = jnp.tanh(proj + h @ params["w_hh_t"] + params["rnn_bias"])
        recs.append(h)
    rec = jnp.stack(recs, axis=1)                                # (B, T, 64)
    gather_em = jnp.take_along_axis(rec, mask, axis=1)[:, 0, :]
    return gather_em @ params["w_l_t"] + params["b_l"]


if __name__ == "__main__":
    key = jax.random.PRNGKey(0)
    B, T = 2, 8
    vect_len, label_num = 20, 3

    kp, kd, km = jax.random.split(key, 3)
    params = init_params(kp, vect_len, label_num)

    data = jax.random.randint(kd, (B, T), 0, vect_len + 2, dtype=jnp.int32)
    # mask: per-sequence time index broadcast across the 64 hidden features
    # (matches torch's rec.gather(1, mask) with mask shape (B, 1, 64)).
    last_idx = jax.random.randint(km, (B,), 0, T, dtype=jnp.int32)
    mask = jnp.broadcast_to(last_idx[:, None, None], (B, 1, HIDDEN)).astype(jnp.int32)

    out = jax.block_until_ready(rnn_e_forward(params, data, mask))

    # Tight check: reference with the same bf16 projection inputs (validates kernel logic).
    ref_bf16 = jax.block_until_ready(reference_forward(params, data, mask, jnp.bfloat16))
    # Loose check: full-f32 torch-semantics reference (bf16 projection inputs introduce
    # ~1e-3-level differences through the recurrence).
    ref_f32 = jax.block_until_ready(reference_forward(params, data, mask, jnp.float32))

    assert out.shape == (B, label_num), out.shape
    assert jnp.allclose(out, ref_bf16, atol=1e-4, rtol=1e-4), (out, ref_bf16)
    assert jnp.allclose(out, ref_f32, atol=3e-2, rtol=3e-2), (out, ref_f32)
    print("KERNEL_OK")
</pallas_src>

<mosaic_0001>
module attributes {stable_mosaic.version = 11 : i64} {
  func.func @rnn_kernel(%arg0: i32, %arg1: memref<128x50xbf16, #tpu.memory_space<vmem>>, %arg2: memref<16x64xi32, #tpu.memory_space<vmem>>, %arg3: memref<50x64xbf16, #tpu.memory_space<vmem>>, %arg4: memref<64x64xf32, #tpu.memory_space<vmem>>, %arg5: memref<1x64xf32, #tpu.memory_space<vmem>>, %arg6: memref<16x64xf32, #tpu.memory_space<vmem>>, %arg7: memref<128x64xf32, #tpu.memory_space<vmem>>) attributes {dimension_semantics = [#tpu.dimension_semantics<parallel>], iteration_bounds = array<i64: 1>, scalar_prefetch = 0 : i64, scratch_operands = 1 : i64, tpu.core_type = #tpu.core_type<tc>, window_params = [{transform_indices = @transform_0, window_bounds = array<i64: 128, 50>}, {transform_indices = @transform_1, window_bounds = array<i64: 16, 64>}, {pipeline_mode = #tpu.pipeline_mode<synchronous>, transform_indices = @transform_2, window_bounds = array<i64: 50, 64>}, {pipeline_mode = #tpu.pipeline_mode<synchronous>, transform_indices = @transform_3, window_bounds = array<i64: 64, 64>}, {pipeline_mode = #tpu.pipeline_mode<synchronous>, transform_indices = @transform_4, window_bounds = array<i64: 1, 64>}, {transform_indices = @transform_5, window_bounds = array<i64: 16, 64>}]} {
    %c0 = arith.constant 0 : index
    %c0_0 = arith.constant 0 : index
    %0 = vector.load %arg1[%c0, %c0_0] : memref<128x50xbf16, #tpu.memory_space<vmem>>, vector<128x50xbf16>
    %c0_1 = arith.constant 0 : index
    %c0_2 = arith.constant 0 : index
    %1 = vector.load %arg3[%c0_1, %c0_2] : memref<50x64xbf16, #tpu.memory_space<vmem>>, vector<50x64xbf16>
    %cst = arith.constant dense<0.000000e+00> : vector<128x64xf32>
    %2 = tpu.matmul %0, %1, %cst {dimension_numbers = #tpu.dot_dimension_numbers<[1], [0], [0], [1], [0, 0, 1, 1], [], []>} : vector<128x50xbf16>, vector<50x64xbf16>, vector<128x64xf32> -> vector<128x64xf32>
    %c0_3 = arith.constant 0 : index
    %c0_4 = arith.constant 0 : index
    %3 = vector.load %arg5[%c0_3, %c0_4] : memref<1x64xf32, #tpu.memory_space<vmem>>, vector<1x64xf32>
    %4 = vector.broadcast %3 : vector<1x64xf32> to vector<128x64xf32>
    %5 = arith.addf %2, %4 : vector<128x64xf32>
    %c0_5 = arith.constant 0 : index
    %c0_6 = arith.constant 0 : index
    %6 = vector.load %arg7[%c0_5, %c0_6] : memref<128x64xf32, #tpu.memory_space<vmem>>, vector<128x64xf32>
    tpu.vector_store %arg7[%c0_5, %c0_6], %5 {strides = array<i32>} : memref<128x64xf32, #tpu.memory_space<vmem>>, vector<128x64xf32>,
    %c0_7 = arith.constant 0 : index
    %c0_8 = arith.constant 0 : index
    %7 = vector.load %arg4[%c0_7, %c0_8] : memref<64x64xf32, #tpu.memory_space<vmem>>, vector<64x64xf32>
    %c0_9 = arith.constant 0 : index
    %c0_10 = arith.constant 0 : index
    %8 = vector.load %arg2[%c0_9, %c0_10] : memref<16x64xi32, #tpu.memory_space<vmem>>, vector<16x64xi32>
    %c0_11 = arith.constant 0 : index
    %c0_12 = arith.constant 0 : index
    %9 = vector.load %arg7[%c0_11, %c0_12] : memref<128x64xf32, #tpu.memory_space<vmem>>, vector<16x64xf32>
    %10 = math.tanh %9 : vector<16x64xf32>
    %c0_i32 = arith.constant 0 : i32
    %11 = vector.broadcast %c0_i32 : i32 to vector<16x64xi32>
    %12 = arith.cmpi eq, %8, %11 : vector<16x64xi32>
    %cst_13 = arith.constant 0.000000e+00 : f32
    %13 = vector.broadcast %cst_13 : f32 to vector<16x64xf32>
    %14 = arith.select %12, %10, %13 : vector<16x64xi1>, vector<16x64xf32>
    %c1_i32 = arith.constant 1 : i32
    %c16_i32 = arith.constant 16 : i32
    %15 = arith.muli %c1_i32, %c16_i32 : i32
    %16 = tpu.assume_multiple %15, 16 : i32
    %17 = arith.index_cast %16 : i32 to index
    %c0_14 = arith.constant 0 : index
    %18 = vector.load %arg7[%17, %c0_14] : memref<128x64xf32, #tpu.memory_space<vmem>>, vector<16x64xf32>
    %cst_15 = arith.constant dense<0.000000e+00> : vector<16x64xf32>
    %19 = tpu.matmul %10, %7, %cst_15 {dimension_numbers = #tpu.dot_dimension_numbers<[1], [0], [0], [1], [0, 0, 1, 1], [], []>} : vector<16x64xf32>, vector<64x64xf32>, vector<16x64xf32> -> vector<16x64xf32>
    %20 = arith.addf %18, %19 : vector<16x64xf32>
    %21 = math.tanh %20 : vector<16x64xf32>
    %22 = vector.broadcast %c1_i32 : i32 to vector<16x64xi32>
    %23 = arith.cmpi eq, %8, %22 : vector<16x64xi32>
    %24 = arith.select %23, %21, %14 : vector<16x64xi1>, vector<16x64xf32>
    %c2_i32 = arith.constant 2 : i32
    %c16_i32_16 = arith.constant 16 : i32
    %25 = arith.muli %c2_i32, %c16_i32_16 : i32
    %26 = tpu.assume_multiple %25, 16 : i32
    %27 = arith.index_cast %26 : i32 to index
    %c0_17 = arith.constant 0 : index
    %28 = vector.load %arg7[%27, %c0_17] : memref<128x64xf32, #tpu.memory_space<vmem>>, vector<16x64xf32>
    %cst_18 = arith.constant dense<0.000000e+00> : vector<16x64xf32>
    %29 = tpu.matmul %21, %7, %cst_18 {dimension_numbers = #tpu.dot_dimension_numbers<[1], [0], [0], [1], [0, 0, 1, 1], [], []>} : vector<16x64xf32>, vector<64x64xf32>, vector<16x64xf32> -> vector<16x64xf32>
    %30 = arith.addf %28, %29 : vector<16x64xf32>
    %31 = math.tanh %30 : vector<16x64xf32>
    %32 = vector.broadcast %c2_i32 : i32 to vector<16x64xi32>
    %33 = arith.cmpi eq, %8, %32 : vector<16x64xi32>
    %34 = arith.select %33, %31, %24 : vector<16x64xi1>, vector<16x64xf32>
    %c3_i32 = arith.constant 3 : i32
    %c16_i32_19 = arith.constant 16 : i32
    %35 = arith.muli %c3_i32, %c16_i32_19 : i32
    %36 = tpu.assume_multiple %35, 16 : i32
    %37 = arith.index_cast %36 : i32 to index
    %c0_20 = arith.constant 0 : index
    %38 = vector.load %arg7[%37, %c0_20] : memref<128x64xf32, #tpu.memory_space<vmem>>, vector<16x64xf32>
    %cst_21 = arith.constant dense<0.000000e+00> : vector<16x64xf32>
    %39 = tpu.matmul %31, %7, %cst_21 {dimension_numbers = #tpu.dot_dimension_numbers<[1], [0], [0], [1], [0, 0, 1, 1], [], []>} : vector<16x64xf32>, vector<64x64xf32>, vector<16x64xf32> -> vector<16x64xf32>
    %40 = arith.addf %38, %39 : vector<16x64xf32>
    %41 = math.tanh %40 : vector<16x64xf32>
    %42 = vector.broadcast %c3_i32 : i32 to vector<16x64xi32>
    %43 = arith.cmpi eq, %8, %42 : vector<16x64xi32>
    %44 = arith.select %43, %41, %34 : vector<16x64xi1>, vector<16x64xf32>
    %c4_i32 = arith.constant 4 : i32
    %c16_i32_22 = arith.constant 16 : i32
    %45 = arith.muli %c4_i32, %c16_i32_22 : i32
    %46 = tpu.assume_multiple %45, 16 : i32
    %47 = arith.index_cast %46 : i32 to index
    %c0_23 = arith.constant 0 : index
    %48 = vector.load %arg7[%47, %c0_23] : memref<128x64xf32, #tpu.memory_space<vmem>>, vector<16x64xf32>
    %cst_24 = arith.constant dense<0.000000e+00> : vector<16x64xf32>
    %49 = tpu.matmul %41, %7, %cst_24 {dimension_numbers = #tpu.dot_dimension_numbers<[1], [0], [0], [1], [0, 0, 1, 1], [], []>} : vector<16x64xf32>, vector<64x64xf32>, vector<16x64xf32> -> vector<16x64xf32>
    %50 = arith.addf %48, %49 : vector<16x64xf32>
    %51 = math.tanh %50 : vector<16x64xf32>
    %52 = vector.broadcast %c4_i32 : i32 to vector<16x64xi32>
    %53 = arith.cmpi eq, %8, %52 : vector<16x64xi32>
    %54 = arith.select %53, %51, %44 : vector<16x64xi1>, vector<16x64xf32>
    %c5_i32 = arith.constant 5 : i32
    %c16_i32_25 = arith.constant 16 : i32
    %55 = arith.muli %c5_i32, %c16_i32_25 : i32
    %56 = tpu.assume_multiple %55, 16 : i32
    %57 = arith.index_cast %56 : i32 to index
    %c0_26 = arith.constant 0 : index
    %58 = vector.load %arg7[%57, %c0_26] : memref<128x64xf32, #tpu.memory_space<vmem>>, vector<16x64xf32>
    %cst_27 = arith.constant dense<0.000000e+00> : vector<16x64xf32>
    %59 = tpu.matmul %51, %7, %cst_27 {dimension_numbers = #tpu.dot_dimension_numbers<[1], [0], [0], [1], [0, 0, 1, 1], [], []>} : vector<16x64xf32>, vector<64x64xf32>, vector<16x64xf32> -> vector<16x64xf32>
    %60 = arith.addf %58, %59 : vector<16x64xf32>
    %61 = math.tanh %60 : vector<16x64xf32>
    %62 = vector.broadcast %c5_i32 : i32 to vector<16x64xi32>
    %63 = arith.cmpi eq, %8, %62 : vector<16x64xi32>
    %64 = arith.select %63, %61, %54 : vector<16x64xi1>, vector<16x64xf32>
    %c6_i32 = arith.constant 6 : i32
    %c16_i32_28 = arith.constant 16 : i32
    %65 = arith.muli %c6_i32, %c16_i32_28 : i32
    %66 = tpu.assume_multiple %65, 16 : i32
    %67 = arith.index_cast %66 : i32 to index
    %c0_29 = arith.constant 0 : index
    %68 = vector.load %arg7[%67, %c0_29] : memref<128x64xf32, #tpu.memory_space<vmem>>, vector<16x64xf32>
    %cst_30 = arith.constant dense<0.000000e+00> : vector<16x64xf32>
    %69 = tpu.matmul %61, %7, %cst_30 {dimension_numbers = #tpu.dot_dimension_numbers<[1], [0], [0], [1], [0, 0, 1, 1], [], []>} : vector<16x64xf32>, vector<64x64xf32>, vector<16x64xf32> -> vector<16x64xf32>
    %70 = arith.addf %68, %69 : vector<16x64xf32>
    %71 = math.tanh %70 : vector<16x64xf32>
    %72 = vector.broadcast %c6_i32 : i32 to vector<16x64xi32>
    %73 = arith.cmpi eq, %8, %72 : vector<16x64xi32>
    %74 = arith.select %73, %71, %64 : vector<16x64xi1>, vector<16x64xf32>
    %c7_i32 = arith.constant 7 : i32
    %c16_i32_31 = arith.constant 16 : i32
    %75 = arith.muli %c7_i32, %c16_i32_31 : i32
    %76 = tpu.assume_multiple %75, 16 : i32
    %77 = arith.index_cast %76 : i32 to index
    %c0_32 = arith.constant 0 : index
    %78 = vector.load %arg7[%77, %c0_32] : memref<128x64xf32, #tpu.memory_space<vmem>>, vector<16x64xf32>
    %cst_33 = arith.constant dense<0.000000e+00> : vector<16x64xf32>
    %79 = tpu.matmul %71, %7, %cst_33 {dimension_numbers = #tpu.dot_dimension_numbers<[1], [0], [0], [1], [0, 0, 1, 1], [], []>} : vector<16x64xf32>, vector<64x64xf32>, vector<16x64xf32> -> vector<16x64xf32>
    %80 = arith.addf %78, %79 : vector<16x64xf32>
    %81 = math.tanh %80 : vector<16x64xf32>
    %82 = vector.broadcast %c7_i32 : i32 to vector<16x64xi32>
    %83 = arith.cmpi eq, %8, %82 : vector<16x64xi32>
    %84 = arith.select %83, %81, %74 : vector<16x64xi1>, vector<16x64xf32>
    %c7_i32_34 = arith.constant 7 : i32
    %c0_35 = arith.constant 0 : index
    %c0_36 = arith.constant 0 : index
    %85 = vector.load %arg6[%c0_35, %c0_36] : memref<16x64xf32, #tpu.memory_space<vmem>>, vector<16x64xf32>
    tpu.vector_store %arg6[%c0_35, %c0_36], %84 {strides = array<i32>} : memref<16x64xf32, #tpu.memory_space<vmem>>, vector<16x64xf32>,
    return
  }
  func.func @transform_0(%arg0: i32) -> (i32, i32) {
    %c0_i32 = arith.constant 0 : i32
    %c0_i32_0 = arith.constant 0 : i32
    return %arg0, %c0_i32 : i32, i32
  }
  func.func @transform_1(%arg0: i32) -> (i32, i32) {
    %c0_i32 = arith.constant 0 : i32
    %c0_i32_0 = arith.constant 0 : i32
    return %arg0, %c0_i32 : i32, i32
  }
  func.func @transform_2(%arg0: i32) -> (i32, i32) {
    %c0_i32 = arith.constant 0 : i32
    %c0_i32_0 = arith.constant 0 : i32
    %c0_i32_1 = arith.constant 0 : i32
    return %c0_i32, %c0_i32_0 : i32, i32
  }
  func.func @transform_3(%arg0: i32) -> (i32, i32) {
    %c0_i32 = arith.constant 0 : i32
    %c0_i32_0 = arith.constant 0 : i32
    %c0_i32_1 = arith.constant 0 : i32
    return %c0_i32, %c0_i32_0 : i32, i32
  }
  func.func @transform_4(%arg0: i32) -> (i32, i32) {
    %c0_i32 = arith.constant 0 : i32
    %c0_i32_0 = arith.constant 0 : i32
    %c0_i32_1 = arith.constant 0 : i32
    return %c0_i32, %c0_i32_0 : i32, i32
  }
  func.func @transform_5(%arg0: i32) -> (i32, i32) {
    %c0_i32 = arith.constant 0 : i32
    %c0_i32_0 = arith.constant 0 : i32
    return %arg0, %c0_i32 : i32, i32
  }
}

</mosaic_0001>

<llo_original>
// kernel: tpu_custom_call.1
$region0: #{tpu_custom_call.1}
  #allocation0 [shape = 'u32[]', space=smem, size = 0x4, offset = 0x4, fixed_abs, tag = 'smem constant byte address 0x4 - core index']
  #allocation1 [shape = 'u32[72,128]{1,0:T(1,128)}', space=vmem, size = 0x9000, scoped, tag = 'internal scratch']
  #allocation2 [shape = 'f32[128,64]{1,0:T(8,128)}', space=vmem, size = 0x10000, scoped, tag = 'scratch operand']
  %s0 = inlined_call_operand.vmem [shape: bf16[128,50], index: 0, kind: input, shape index: {}]
  %s1 = inlined_call_operand.hbm [shape: s32[16,64], index: 1, kind: input, shape index: {}]
  %s2 = inlined_call_operand.vmem [shape: bf16[50,64], index: 2, kind: input, shape index: {}]
  %s3 = inlined_call_operand.vmem [shape: f32[64,64], index: 3, kind: input, shape index: {}]
  %s4 = inlined_call_operand.vmem [shape: f32[1,64], index: 4, kind: input, shape index: {}]
  %s5 = inlined_call_operand.hbm [shape: f32[16,64], index: 5, kind: output, shape index: {}]
  %s6 = sld [smem:[#allocation0]]
  $region34: #{tpu_custom_call.1} parent=0
    _
  %s8 = ssub.s32 1, %s6
  %s9 = scalar_select 0, %s8, %s6
  $region1: #{tpu_custom_call.1} parent=0
    #allocation3 [shape = 'u8[8192]{0}', space=vmem, size = 0x2000, scoped, tag = 'input window, operand 1, single buffered']
    #allocation4 [shape = 's32[1]{0}', space=sflag, size = 0x4, scoped, tag = 'scoped memory for tpu_custom_call.1']
    #allocation5 [shape = 's32[1]{0}', space=sflag, size = 0x4, scoped, tag = 'scoped memory for tpu_custom_call.1']
    #allocation6 [shape = 'u8[8192]{0}', space=vmem, size = 0x2000, scoped, tag = 'output window, operand 0, single buffered']
    %10 = vsyncpa [#allocation4], 0
    %11 = vsyncpa [#allocation5], 0
    // Predicated region
    $region2: #{tpu_custom_call.1} parent=1 // pred_check
      _
    $region3: #{tpu_custom_call.1} parent=1 // pred_check_branch
      %13 = sbr.rel (0) target = $region5
    $region4: #{tpu_custom_call.1} parent=1 // pred_region
      _
    $region5: #{tpu_custom_call.1} parent=1 // pred_fallthru
      _
    // Predicated region
    $region6: #{tpu_custom_call.1} parent=1 // pred_check
      _
    $region7: #{tpu_custom_call.1} parent=1 // pred_check_branch
      %15 = sbr.rel (0) target = $region9
    $region8: #{tpu_custom_call.1} parent=1 // pred_region
      %17 = vsyncadd [#allocation4], 0
      %s18 = sshll.u32 %s1, 4
      %s19 = int_to_ptr.hbm [resolvable:$true] %s18
      %s20 = sshll.u32 [#allocation3], 4
      %s21 = int_to_ptr.vmem [resolvable:$true] %s20
      %26 = dma.hbm_to_vmem [thread:$0]  %s19, 256, %s21, [#allocation4], 128, 128, 8
    $region9: #{tpu_custom_call.1} parent=1 // pred_fallthru
      _
    // Predicated region
    $region10: #{tpu_custom_call.1} parent=1 // pred_check
      _
    $region11: #{tpu_custom_call.1} parent=1 // pred_check_branch
      %28 = sbr.rel (0) target = $region13
    $region12: #{tpu_custom_call.1} parent=1 // pred_region
      _
    $region13: #{tpu_custom_call.1} parent=1 // pred_fallthru
      _
    // Predicated region
    $region14: #{tpu_custom_call.1} parent=1 // pred_check
      _
    $region15: #{tpu_custom_call.1} parent=1 // pred_check_branch
      %30 = sbr.rel (0) target = $region17
    $region16: #{tpu_custom_call.1} parent=1 // pred_region
      _
    $region17: #{tpu_custom_call.1} parent=1 // pred_fallthru
      _
    // Predicated region
    $region18: #{tpu_custom_call.1} parent=1 // pred_check
      _
    $region19: #{tpu_custom_call.1} parent=1 // pred_check_branch
      %32 = sbr.rel (0) target = $region21
    $region20: #{tpu_custom_call.1} parent=1 // pred_region
      _
    $region21: #{tpu_custom_call.1} parent=1 // pred_fallthru
      _
    // Predicated region
    $region22: #{tpu_custom_call.1} parent=1 // pred_check
      _
    $region23: #{tpu_custom_call.1} parent=1 // pred_check_branch
      %34 = sbr.rel (0) target = $region25
    $region24: #{tpu_custom_call.1} parent=1 // pred_region
      %36 = dma.done [#allocation4], 256
    $region25: #{tpu_custom_call.1} parent=1 // pred_fallthru
      _
    %v38 = vld [vmem:[%s0] sm:$0xf]
    %v39 = vld [vmem:[%s0 + $0x4] sm:$0xf]
    %v40 = vld [vmem:[%s0 + $0x8] sm:$0xf]
    %v41 = vld [vmem:[%s0 + $0xc] sm:$0xf]
    %v42 = vld [vmem:[%s0 + $0x10] sm:$0xf]
    %v43 = vld [vmem:[%s0 + $0x14] sm:$0xf]
    %v44 = vld [vmem:[%s0 + $0x18] sm:$0xf]
    %v45 = vld [vmem:[%s0 + $0x1c] sm:$0xf]
    %v46 = vld [vmem:[%s0 + $0x20] sm:$0xf]
    %v47 = vld [vmem:[%s0 + $0x24] sm:$0xf]
    %v48 = vld [vmem:[%s0 + $0x28] sm:$0xf]
    %v49 = vld [vmem:[%s0 + $0x2c] sm:$0xf]
    %v50 = vld [vmem:[%s0 + $0x30] sm:$0xf]
    %v51 = vld [vmem:[%s0 + $0x34] sm:$0xf]
    %v52 = vld [vmem:[%s0 + $0x38] sm:$0xf]
    %v53 = vld [vmem:[%s0 + $0x3c] sm:$0xf]
    %v54 = vld [vmem:[%s2] sm:$0xf]
    %v55 = vld [vmem:[%s2 + $0x4] sm:$0xf]
    %v56 = vld [vmem:[%s2 + $0x8] sm:$0xf]
    %v57 = vld [vmem:[%s2 + $0xc] sm:$0xf]
    %v58 = vld [vmem:[%s2 + $0x10] sm:$0xf]
    %v59 = vld [vmem:[%s2 + $0x14] sm:$0xf]
    %v60 = vld [vmem:[%s2 + $0x18] sm:$0x1]
    %v61 = vld [vmem:[%s4] sm:$0x1]
    %v63 = vperm.slane %v61, 0
    %v81 = vunpack.c.l.b16 %v38
    %v82 = vunpack.c.l.b16 %v39
    %v83 = vunpack.c.l.b16 %v40
    %v84 = vunpack.c.l.b16 %v41
    %v85 = vunpack.c.l.b16 %v42
    %v86 = vunpack.c.l.b16 %v43
    %v87 = vunpack.c.l.b16 %v44
    %v88 = vunpack.c.l.b16 %v45
    %v89 = vunpack.c.l.b16 %v46
    %v90 = vunpack.c.l.b16 %v47
    %v91 = vunpack.c.l.b16 %v48
    %v92 = vunpack.c.l.b16 %v49
    %v93 = vunpack.c.l.b16 %v50
    %v94 = vunpack.c.l.b16 %v51
    %v95 = vunpack.c.l.b16 %v52
    %v96 = vunpack.c.l.b16 %v53
    %v97 = vpack.c.b16 %v82, %v81
    %v98 = vpack.c.b16 %v84, %v83
    %v99 = vpack.c.b16 %v86, %v85
    %v100 = vpack.c.b16 %v88, %v87
    %v101 = vpack.c.b16 %v90, %v89
    %v102 = vpack.c.b16 %v92, %v91
    %v103 = vpack.c.b16 %v94, %v93
    %v104 = vpack.c.b16 %v96, %v95
    %v112 = vunpack.c.l.b16 %v54
    %v113 = vunpack.c.l.b16 %v55
    %v114 = vunpack.c.l.b16 %v56
    %v115 = vunpack.c.l.b16 %v57
    %v116 = vunpack.c.l.b16 %v58
    %v117 = vunpack.c.l.b16 %v59
    %v118 = vunpack.c.l.b16 %v60
    %v119 = vpack.c.b16 %v113, %v112
    %v120 = vpack.c.b16 %v115, %v114
    %v121 = vpack.c.b16 %v117, %v116
    %v122 = vpack.c.b16 %v118, %v118
    %vm126 = vcmask 408576
    %v128 = vsel %vm126, %v97, 0
    %v131 = vsel %vm126, %v98, 0
    %v134 = vsel %vm126, %v99, 0
    %v137 = vsel %vm126, %v100, 0
    %v140 = vsel %vm126, %v101, 0
    %v143 = vsel %vm126, %v102, 0
    %v146 = vsel %vm126, %v103, 0
    %v149 = vsel %vm126, %v104, 0
    %vm151 = vcmask 1040384
    %v153 = vsel %vm151, %v122, 0
    %155 = vmatpush.bf16.msra.mxu0 0
    %156 = vmatpush.bf16.msra.mxu0 0
    %157 = vmatpush.bf16.msra.mxu0 0
    %158 = vmatpush.bf16.msra.mxu0 0
    %159 = vmatpush.bf16.msra.mxu0 %v153
    %160 = vmatpush.bf16.msra.mxu0 %v121
    %161 = vmatpush.bf16.msra.mxu0 %v120
    %162 = vmatpush.bf16.msra.mxu0 %v119
    %163 = vmatmul.bf16.gmra.mxu0 %v128
    %v164 = vpop.f32.mrf.mxu0
    %v165 = vadd.f32 %v63, %v164
    %v166 = vpop.f32.mrf.mxu0
    %v167 = vadd.f32 %v63, %v166
    %168 = vmatmul.bf16.gmra.mxu0 %v131
    %v169 = vpop.f32.mrf.mxu0
    %v170 = vadd.f32 %v63, %v169
    %v171 = vpop.f32.mrf.mxu0
    %v172 = vadd.f32 %v63, %v171
    %173 = vmatmul.bf16.gmra.mxu0 %v134
    %v174 = vpop.f32.mrf.mxu0
    %v175 = vadd.f32 %v63, %v174
    %v176 = vpop.f32.mrf.mxu0
    %v177 = vadd.f32 %v63, %v176
    %178 = vmatmul.bf16.gmra.mxu0 %v137
    %v179 = vpop.f32.mrf.mxu0
    %v180 = vadd.f32 %v63, %v179
    %v181 = vpop.f32.mrf.mxu0
    %v182 = vadd.f32 %v63, %v181
    %183 = vmatmul.bf16.gmra.mxu0 %v140
    %v184 = vpop.f32.mrf.mxu0
    %v185 = vadd.f32 %v63, %v184
    %v186 = vpop.f32.mrf.mxu0
    %v187 = vadd.f32 %v63, %v186
    %188 = vmatmul.bf16.gmra.mxu0 %v143
    %v189 = vpop.f32.mrf.mxu0
    %v190 = vadd.f32 %v63, %v189
    %v191 = vpop.f32.mrf.mxu0
    %v192 = vadd.f32 %v63, %v191
    %193 = vmatmul.bf16.gmra.mxu0 %v146
    %v194 = vpop.f32.mrf.mxu0
    %v195 = vadd.f32 %v63, %v194
    %v196 = vpop.f32.mrf.mxu0
    %v197 = vadd.f32 %v63, %v196
    %198 = vmatmul.bf16.gmra.mxu0 %v149
    %v199 = vpop.f32.mrf.mxu0
    %v200 = vadd.f32 %v63, %v199
    %v201 = vpop.f32.mrf.mxu0
    %v202 = vadd.f32 %v63, %v201
    %203 = vdwg.mxu0
    %vm204 = vcmask 523264
    %205 = vst.msk [vmem:[#allocation2] sm:$0xff] %vm204, %v165
    %206 = vst.msk [vmem:[#allocation2 + $0x8] sm:$0xff] %vm204, %v167
    %207 = vst.msk [vmem:[#allocation2 + $0x10] sm:$0xff] %vm204, %v170
    %208 = vst.msk [vmem:[#allocation2 + $0x18] sm:$0xff] %vm204, %v172
    %209 = vst.msk [vmem:[#allocation2 + $0x20] sm:$0xff] %vm204, %v175
    %210 = vst.msk [vmem:[#allocation2 + $0x28] sm:$0xff] %vm204, %v177
    %211 = vst.msk [vmem:[#allocation2 + $0x30] sm:$0xff] %vm204, %v180
    %212 = vst.msk [vmem:[#allocation2 + $0x38] sm:$0xff] %vm204, %v182
    %213 = vst.msk [vmem:[#allocation2 + $0x40] sm:$0xff] %vm204, %v185
    %214 = vst.msk [vmem:[#allocation2 + $0x48] sm:$0xff] %vm204, %v187
    %215 = vst.msk [vmem:[#allocation2 + $0x50] sm:$0xff] %vm204, %v190
    %216 = vst.msk [vmem:[#allocation2 + $0x58] sm:$0xff] %vm204, %v192
    %217 = vst.msk [vmem:[#allocation2 + $0x60] sm:$0xff] %vm204, %v195
    %218 = vst.msk [vmem:[#allocation2 + $0x68] sm:$0xff] %vm204, %v197
    %219 = vst.msk [vmem:[#allocation2 + $0x70] sm:$0xff] %vm204, %v200
    %220 = vst.msk [vmem:[#allocation2 + $0x78] sm:$0xff] %vm204, %v202
    %v221 = vld [vmem:[%s3] sm:$0xff]
    %v222 = vld [vmem:[%s3 + $0x8] sm:$0xff]
    %v223 = vld [vmem:[%s3 + $0x10] sm:$0xff]
    %v224 = vld [vmem:[%s3 + $0x18] sm:$0xff]
    %v225 = vld [vmem:[%s3 + $0x20] sm:$0xff]
    %v226 = vld [vmem:[%s3 + $0x28] sm:$0xff]
    %v227 = vld [vmem:[%s3 + $0x30] sm:$0xff]
    %v228 = vld [vmem:[%s3 + $0x38] sm:$0xff]
    %v229 = vld [vmem:[#allocation3] sm:$0xff]
    %v230 = vld [vmem:[#allocation3 + $0x8] sm:$0xff]
    %v231 = vld [vmem:[#allocation2] sm:$0xff]
    %v232 = vld [vmem:[#allocation2 + $0x8] sm:$0xff]
    %v233 = vtanh.pop %v231
    %v234 = vtanh.pop %v232
    %vm235 = vcmp.eq.s32.totalorder %v229, 0
    %vm236 = vcmp.eq.s32.totalorder %v230, 0
    %v237 = vsel %vm235, %v233, 0.0
    %v238 = vsel %vm236, %v234, 0.0
    %s239 = scalar_lea.vmem [#allocation2], 16
    %v240 = vld [vmem:[%s239] sm:$0xff]
    %v241 = vld [vmem:[%s239 + $0x8] sm:$0xff]
    %v243 = vsel %vm204, %v233, 0
    %v246 = vsel %vm204, %v234, 0
    %248 = vmatpush.msra.mxu0 0.0
    %249 = vmatpush.msra.mxu0 0.0
    %250 = vmatpush.msra.mxu0 0.0
    %251 = vmatpush.msra.mxu0 0.0
    %252 = vmatpush.msra.mxu0 0.0
    %253 = vmatpush.msra.mxu0 0.0
    %254 = vmatpush.msra.mxu0 0.0
    %255 = vmatpush.msra.mxu0 0.0
    %256 = vmatpush.msra.mxu0 %v228
    %257 = vmatpush.msra.mxu0 %v227
    %258 = vmatpush.msra.mxu0 %v226
    %259 = vmatpush.msra.mxu0 %v225
    %260 = vmatpush.msra.mxu0 %v224
    %261 = vmatpush.msra.mxu0 %v223
    %262 = vmatpush.msra.mxu0 %v222
    %263 = vmatpush.msra.mxu0 %v221
    %264 = vmatmul.f32.gmra.mxu0 %v243
    %v265 = vpop.f32.mrf.mxu0
    %v266 = vadd.f32 0.0, %v265
    %267 = vmatmul.f32.gmra.mxu0 %v246
    %v268 = vpop.f32.mrf.mxu0
    %v269 = vadd.f32 0.0, %v268
    %270 = vdwg.mxu0
    %v271 = vadd.f32 %v240, %v266
    %v272 = vadd.f32 %v241, %v269
    %v273 = vtanh.pop %v271
    %v274 = vtanh.pop %v272
    %vm275 = vcmp.eq.s32.totalorder %v229, 1
    %vm276 = vcmp.eq.s32.totalorder %v230, 1
    %v277 = vsel %vm275, %v273, %v237
    %v278 = vsel %vm276, %v274, %v238
    %s279 = scalar_lea.vmem [#allocation2], 32
    %v280 = vld [vmem:[%s279] sm:$0xff]
    %v281 = vld [vmem:[%s279 + $0x8] sm:$0xff]
    %v283 = vsel %vm204, %v273, 0
    %v286 = vsel %vm204, %v274, 0
    %288 = vmatpush.msra.mxu0 0.0
    %289 = vmatpush.msra.mxu0 0.0
    %290 = vmatpush.msra.mxu0 0.0
    %291 = vmatpush.msra.mxu0 0.0
    %292 = vmatpush.msra.mxu0 0.0
    %293 = vmatpush.msra.mxu0 0.0
    %294 = vmatpush.msra.mxu0 0.0
    %295 = vmatpush.msra.mxu0 0.0
    %296 = vmatpush.msra.mxu0 %v228
    %297 = vmatpush.msra.mxu0 %v227
    %298 = vmatpush.msra.mxu0 %v226
    %299 = vmatpush.msra.mxu0 %v225
    %300 = vmatpush.msra.mxu0 %v224
    %301 = vmatpush.msra.mxu0 %v223
    %302 = vmatpush.msra.mxu0 %v222
    %303 = vmatpush.msra.mxu0 %v221
    %304 = vmatmul.f32.gmra.mxu0 %v283
    %v305 = vpop.f32.mrf.mxu0
    %v306 = vadd.f32 0.0, %v305
    %307 = vmatmul.f32.gmra.mxu0 %v286
    %v308 = vpop.f32.mrf.mxu0
    %v309 = vadd.f32 0.0, %v308
    %310 = vdwg.mxu0
    %v311 = vadd.f32 %v280, %v306
    %v312 = vadd.f32 %v281, %v309
    %v313 = vtanh.pop %v311
    %v314 = vtanh.pop %v312
    %vm315 = vcmp.eq.s32.totalorder %v229, 2
    %vm316 = vcmp.eq.s32.totalorder %v230, 2
    %v317 = vsel %vm315, %v313, %v277
    %v318 = vsel %vm316, %v314, %v278
    %s319 = scalar_lea.vmem [#allocation2], 48
    %v320 = vld [vmem:[%s319] sm:$0xff]
    %v321 = vld [vmem:[%s319 + $0x8] sm:$0xff]
    %v323 = vsel %vm204, %v313, 0
    %v326 = vsel %vm204, %v314, 0
    %328 = vmatpush.msra.mxu0 0.0
    %329 = vmatpush.msra.mxu0 0.0
    %330 = vmatpush.msra.mxu0 0.0
    %331 = vmatpush.msra.mxu0 0.0
    %332 = vmatpush.msra.mxu0 0.0
    %333 = vmatpush.msra.mxu0 0.0
    %334 = vmatpush.msra.mxu0 0.0
    %335 = vmatpush.msra.mxu0 0.0
    %336 = vmatpush.msra.mxu0 %v228
    %337 = vmatpush.msra.mxu0 %v227
    %338 = vmatpush.msra.mxu0 %v226
    %339 = vmatpush.msra.mxu0 %v225
    %340 = vmatpush.msra.mxu0 %v224
    %341 = vmatpush.msra.mxu0 %v223
    %342 = vmatpush.msra.mxu0 %v222
    %343 = vmatpush.msra.mxu0 %v221
    %344 = vmatmul.f32.gmra.mxu0 %v323
    %v345 = vpop.f32.mrf.mxu0
    %v346 = vadd.f32 0.0, %v345
    %347 = vmatmul.f32.gmra.mxu0 %v326
    %v348 = vpop.f32.mrf.mxu0
    %v349 = vadd.f32 0.0, %v348
    %350 = vdwg.mxu0
    %v351 = vadd.f32 %v320, %v346
    %v352 = vadd.f32 %v321, %v349
    %v353 = vtanh.pop %v351
    %v354 = vtanh.pop %v352
    %vm355 = vcmp.eq.s32.totalorder %v229, 3
    %vm356 = vcmp.eq.s32.totalorder %v230, 3
    %v357 = vsel %vm355, %v353, %v317
    %v358 = vsel %vm356, %v354, %v318
    %s359 = scalar_lea.vmem [#allocation2], 64
    %v360 = vld [vmem:[%s359] sm:$0xff]
    %v361 = vld [vmem:[%s359 + $0x8] sm:$0xff]
    %v363 = vsel %vm204, %v353, 0
    %v366 = vsel %vm204, %v354, 0
    %368 = vmatpush.msra.mxu0 0.0
    %369 = vmatpush.msra.mxu0 0.0
    %370 = vmatpush.msra.mxu0 0.0
    %371 = vmatpush.msra.mxu0 0.0
    %372 = vmatpush.msra.mxu0 0.0
    %373 = vmatpush.msra.mxu0 0.0
    %374 = vmatpush.msra.mxu0 0.0
    %375 = vmatpush.msra.mxu0 0.0
    %376 = vmatpush.msra.mxu0 %v228
    %377 = vmatpush.msra.mxu0 %v227
    %378 = vmatpush.msra.mxu0 %v226
    %379 = vmatpush.msra.mxu0 %v225
    %380 = vmatpush.msra.mxu0 %v224
    %381 = vmatpush.msra.mxu0 %v223
    %382 = vmatpush.msra.mxu0 %v222
    %383 = vmatpush.msra.mxu0 %v221
    %384 = vmatmul.f32.gmra.mxu0 %v363
    %v385 = vpop.f32.mrf.mxu0
    %v386 = vadd.f32 0.0, %v385
    %387 = vmatmul.f32.gmra.mxu0 %v366
    %v388 = vpop.f32.mrf.mxu0
    %v389 = vadd.f32 0.0, %v388
    %390 = vdwg.mxu0
    %v391 = vadd.f32 %v360, %v386
    %v392 = vadd.f32 %v361, %v389
    %v393 = vtanh.pop %v391
    %v394 = vtanh.pop %v392
    %vm395 = vcmp.eq.s32.totalorder %v229, 4
    %vm396 = vcmp.eq.s32.totalorder %v230, 4
    %v397 = vsel %vm395, %v393, %v357
    %v398 = vsel %vm396, %v394, %v358
    %s399 = scalar_lea.vmem [#allocation2], 80
    %v400 = vld [vmem:[%s399] sm:$0xff]
    %v401 = vld [vmem:[%s399 + $0x8] sm:$0xff]
    %v403 = vsel %vm204, %v393, 0
    %v406 = vsel %vm204, %v394, 0
    %408 = vmatpush.msra.mxu0 0.0
    %409 = vmatpush.msra.mxu0 0.0
    %410 = vmatpush.msra.mxu0 0.0
    %411 = vmatpush.msra.mxu0 0.0
    %412 = vmatpush.msra.mxu0 0.0
    %413 = vmatpush.msra.mxu0 0.0
    %414 = vmatpush.msra.mxu0 0.0
    %415 = vmatpush.msra.mxu0 0.0
    %416 = vmatpush.msra.mxu0 %v228
    %417 = vmatpush.msra.mxu0 %v227
    %418 = vmatpush.msra.mxu0 %v226
    %419 = vmatpush.msra.mxu0 %v225
    %420 = vmatpush.msra.mxu0 %v224
    %421 = vmatpush.msra.mxu0 %v223
    %422 = vmatpush.msra.mxu0 %v222
    %423 = vmatpush.msra.mxu0 %v221
    %424 = vmatmul.f32.gmra.mxu0 %v403
    %v425 = vpop.f32.mrf.mxu0
    %v426 = vadd.f32 0.0, %v425
    %427 = vmatmul.f32.gmra.mxu0 %v406
    %v428 = vpop.f32.mrf.mxu0
    %v429 = vadd.f32 0.0, %v428
    %430 = vdwg.mxu0
    %v431 = vadd.f32 %v400, %v426
    %v432 = vadd.f32 %v401, %v429
    %v433 = vtanh.pop %v431
    %v434 = vtanh.pop %v432
    %vm435 = vcmp.eq.s32.totalorder %v229, 5
    %vm436 = vcmp.eq.s32.totalorder %v230, 5
    %v437 = vsel %vm435, %v433, %v397
    %v438 = vsel %vm436, %v434, %v398
    %s439 = scalar_lea.vmem [#allocation2], 96
    %v440 = vld [vmem:[%s439] sm:$0xff]
    %v441 = vld [vmem:[%s439 + $0x8] sm:$0xff]
    %v443 = vsel %vm204, %v433, 0
    %v446 = vsel %vm204, %v434, 0
    %448 = vmatpush.msra.mxu0 0.0
    %449 = vmatpush.msra.mxu0 0.0
    %450 = vmatpush.msra.mxu0 0.0
    %451 = vmatpush.msra.mxu0 0.0
    %452 = vmatpush.msra.mxu0 0.0
    %453 = vmatpush.msra.mxu0 0.0
    %454 = vmatpush.msra.mxu0 0.0
    %455 = vmatpush.msra.mxu0 0.0
    %456 = vmatpush.msra.mxu0 %v228
    %457 = vmatpush.msra.mxu0 %v227
    %458 = vmatpush.msra.mxu0 %v226
    %459 = vmatpush.msra.mxu0 %v225
    %460 = vmatpush.msra.mxu0 %v224
    %461 = vmatpush.msra.mxu0 %v223
    %462 = vmatpush.msra.mxu0 %v222
    %463 = vmatpush.msra.mxu0 %v221
    %464 = vmatmul.f32.gmra.mxu0 %v443
    %v465 = vpop.f32.mrf.mxu0
    %v466 = vadd.f32 0.0, %v465
    %467 = vmatmul.f32.gmra.mxu0 %v446
    %v468 = vpop.f32.mrf.mxu0
    %v469 = vadd.f32 0.0, %v468
    %470 = vdwg.mxu0
    %v471 = vadd.f32 %v440, %v466
    %v472 = vadd.f32 %v441, %v469
    %v473 = vtanh.pop %v471
    %v474 = vtanh.pop %v472
    %vm475 = vcmp.eq.s32.totalorder %v229, 6
    %vm476 = vcmp.eq.s32.totalorder %v230, 6
    %v477 = vsel %vm475, %v473, %v437
    %v478 = vsel %vm476, %v474, %v438
    %s479 = scalar_lea.vmem [#allocation2], 112
    %v480 = vld [vmem:[%s479] sm:$0xff]
    %v481 = vld [vmem:[%s479 + $0x8] sm:$0xff]
    %v483 = vsel %vm204, %v473, 0
    %v486 = vsel %vm204, %v474, 0
    %488 = vmatpush.msra.mxu0 0.0
    %489 = vmatpush.msra.mxu0 0.0
    %490 = vmatpush.msra.mxu0 0.0
    %491 = vmatpush.msra.mxu0 0.0
    %492 = vmatpush.msra.mxu0 0.0
    %493 = vmatpush.msra.mxu0 0.0
    %494 = vmatpush.msra.mxu0 0.0
    %495 = vmatpush.msra.mxu0 0.0
    %496 = vmatpush.msra.mxu0 %v228
    %497 = vmatpush.msra.mxu0 %v227
    %498 = vmatpush.msra.mxu0 %v226
    %499 = vmatpush.msra.mxu0 %v225
    %500 = vmatpush.msra.mxu0 %v224
    %501 = vmatpush.msra.mxu0 %v223
    %502 = vmatpush.msra.mxu0 %v222
    %503 = vmatpush.msra.mxu0 %v221
    %504 = vmatmul.f32.gmra.mxu0 %v483
    %v505 = vpop.f32.mrf.mxu0
    %v506 = vadd.f32 0.0, %v505
    %507 = vmatmul.f32.gmra.mxu0 %v486
    %v508 = vpop.f32.mrf.mxu0
    %v509 = vadd.f32 0.0, %v508
    %510 = vdwg.mxu0
    %v511 = vadd.f32 %v480, %v506
    %v512 = vadd.f32 %v481, %v509
    %v513 = vtanh.pop %v511
    %v514 = vtanh.pop %v512
    %vm515 = vcmp.eq.s32.totalorder %v229, 7
    %vm516 = vcmp.eq.s32.totalorder %v230, 7
    %v517 = vsel %vm515, %v513, %v477
    %v518 = vsel %vm516, %v514, %v478
    %519 = vst.msk [vmem:[#allocation6] sm:$0xff] %vm204, %v517
    %520 = vst.msk [vmem:[#allocation6 + $0x8] sm:$0xff] %vm204, %v518
    // Predicated region
    $region26: #{tpu_custom_call.1} parent=1 // pred_check
      _
    $region27: #{tpu_custom_call.1} parent=1 // pred_check_branch
      %522 = sbr.rel (0) target = $region29
    $region28: #{tpu_custom_call.1} parent=1 // pred_region
      %524 = vsyncadd [#allocation5], 0
      %s525 = sshll.u32 [#allocation6], 4
      %s526 = int_to_ptr.vmem [resolvable:$true] %s525
      %s527 = sshll.u32 %s5, 4
      %s528 = int_to_ptr.hbm [resolvable:$true] %s527
      %533 = dma.vmem_to_hbm [thread:$0]  %s526, 256, %s528, [#allocation5], 128, 128, 8
    $region29: #{tpu_custom_call.1} parent=1 // pred_fallthru
      _
    // Predicated region
    $region30: #{tpu_custom_call.1} parent=1 // pred_check
      _
    $region31: #{tpu_custom_call.1} parent=1 // pred_check_branch
      %535 = sbr.rel (0) target = $region33
    $region32: #{tpu_custom_call.1} parent=1 // pred_region
      %537 = dma.done [#allocation5], 256
    $region33: #{tpu_custom_call.1} parent=1 // pred_fallthru
      _
    %538 = vsyncpa [#allocation4], 1
    %539 = vsyncpa [#allocation5], 1

</llo_original>
